<compile_context>
chip_gen: v5e
topology: v5e:2x2
jax: 0.10.0
libtpu: 0.0.40
codegen_flags: <defaults>
</compile_context>

<pallas_src>
import functools

import jax
import jax.numpy as jnp
from jax.experimental import pallas as pl
from jax.experimental.pallas import tpu as pltpu


_LANE = 128
_BN_EPS = 1e-5
_MXU_STATS_MIN_B = 256   # switch batch-stat reductions onto the MXU above this


def _round_up(n, m=_LANE):
    return ((n + m - 1) // m) * m


# ----------------------------------------------------------------------------
# Fused Pallas kernel: every (Linear -> BN(batch stats) -> ReLU) layer of the
# encoder and decoder runs back-to-back on VMEM-resident tiles, then sigmoid.
# Operand layout: refs = (x, w_0, gb_0, w_1, gb_1, ..., out) with
#   w_l  : (Din_pad, Dout_pad)  f32 or bf16 (pre-cast in the wrapper)
#   gb_l : (2, Dout_pad)        f32, row 0 = gamma, row 1 = beta
# ----------------------------------------------------------------------------
def _fused_ae_kernel(*refs, n_layers: int, eps: float, mxu_stats: bool):
    x_ref = refs[0]
    o_ref = refs[-1]
    layer_refs = refs[1:-1]

    h = x_ref[...]                          # (B, D0_pad) f32, padded cols are 0
    B = h.shape[0]
    inv_b = 1.0 / B
    if mxu_stats:
        # Hoisted out of the layer loop (JAX doesn't CSE broadcasts).
        ones_row = jnp.ones((1, B), jnp.float32)

    for l in range(n_layers):
        w_ref = layer_refs[2 * l]
        gb_ref = layer_refs[2 * l + 1]
        w = w_ref[...]

        # Only the activation is cast when the weights were pre-cast to bf16;
        # all other math stays f32.
        lhs = h.astype(w.dtype) if w.dtype != h.dtype else h

        # Linear (MXU).  Bias intentionally omitted: BN subtracts the batch
        # mean right after, so it cancels exactly.
        h = jnp.dot(lhs, w, preferred_element_type=jnp.float32)

        # One-pass training-mode batch stats (biased variance, eps=1e-5),
        # folded into a single scale/shift FMA.
        # TODO(synk): if wide layers show cancellation in E[x^2]-E[x]^2, switch
        # to a shifted sum-of-squares (subtract h[0:1] as an offset).
        if mxu_stats:
            # Batch sums on the MXU (1/K of the main matmul's MACs, frees the
            # VPU/XLU sublane-reduction slots at large B).
            mean = jnp.dot(ones_row, h, preferred_element_type=jnp.float32) * inv_b
            ex2 = jnp.dot(ones_row, h * h, preferred_element_type=jnp.float32) * inv_b
        else:
            mean = jnp.sum(h, axis=0, keepdims=True) * inv_b        # (1, Dout)
            ex2 = jnp.sum(h * h, axis=0, keepdims=True) * inv_b     # (1, Dout)
        var = jnp.maximum(ex2 - mean * mean, 0.0)
        inv = jax.lax.rsqrt(var + eps)                               # EUP

        gb = gb_ref[...]                                             # (2, Dout)
        scale = gb[0:1, :] * inv
        shift = gb[1:2, :] - mean * scale

        # BN + ReLU.  Padded columns: gamma=beta=0 -> stay exactly 0.
        h = jnp.maximum(h * scale + shift, 0.0)

    # Final sigmoid (applied after the decoder's last ReLU, as in PyTorch).
    o_ref[...] = jax.nn.sigmoid(h)


# ----------------------------------------------------------------------------
# Parameter init (PyTorch nn.Linear / fresh nn.BatchNorm1d defaults)
# ----------------------------------------------------------------------------
def init_ae_linear_params(key, data_size, hidden_dims):
    """hidden_dims is the *post-insert* list: [D, h1, h2, ...]."""
    params = {"encoder": [], "decoder": []}

    def make_layer(k, d_in, d_out):
        kw, kb = jax.random.split(k)
        bound = 1.0 / jnp.sqrt(jnp.float32(d_in))
        w = jax.random.uniform(kw, (d_in, d_out), jnp.float32, -bound, bound)
        b = jax.random.uniform(kb, (1, d_out), jnp.float32, -bound, bound)
        gamma = jnp.ones((1, d_out), jnp.float32)
        beta = jnp.zeros((1, d_out), jnp.float32)
        return {"w": w, "b": b, "gamma": gamma, "beta": beta}

    n = len(hidden_dims)
    keys = jax.random.split(key, 2 * (n - 1))
    ki = 0
    for i in range(n - 1):                     # encoder
        params["encoder"].append(make_layer(keys[ki], hidden_dims[i],
                                            hidden_dims[i + 1]))
        ki += 1
    for i in reversed(range(1, n)):            # decoder (mirrored)
        params["decoder"].append(make_layer(keys[ki], hidden_dims[i],
                                            hidden_dims[i - 1]))
        ki += 1
    return params


# ----------------------------------------------------------------------------
# One-time parameter preparation: zero-pad to lane-dense (multiple-of-128)
# dims, pack gamma/beta into a single (2, Dout_pad) operand, optionally
# pre-cast weights to bf16.  Call ONCE; the result is reused every forward.
# ----------------------------------------------------------------------------
def prepare_ae_params(params, *, use_bf16_matmul=False):
    layers = list(params["encoder"]) + list(params["decoder"])
    w_dtype = jnp.bfloat16 if use_bf16_matmul else jnp.float32

    ops = []
    for layer in layers:
        d_in, d_out = layer["w"].shape
        pi, po = _round_up(d_in), _round_up(d_out)
        w = jnp.zeros((pi, po), jnp.float32).at[:d_in, :d_out].set(layer["w"])
        w = w.astype(w_dtype)
        gb = jnp.zeros((2, po), jnp.float32)
        gb = gb.at[0, :d_out].set(layer["gamma"][0])
        gb = gb.at[1, :d_out].set(layer["beta"][0])
        # Linear bias is not passed (cancelled exactly by BN mean subtraction).
        ops.append(w)
        ops.append(gb)

    meta = {"n_layers": len(layers), "d_out": int(layers[-1]["w"].shape[1])}
    return tuple(ops), meta


# ----------------------------------------------------------------------------
# Forward pass (Pallas) — jitted so the input pad / output slice fuse around
# the pallas_call — and a pure-JAX reference.
# ----------------------------------------------------------------------------
@functools.partial(jax.jit, static_argnames=("n_layers", "d_out", "data_size"))
def _ae_forward_jit(x, ops, *, n_layers, d_out, data_size):
    B = x.shape[0]
    D = data_size[0] * data_size[1]
    Dp = _round_up(D)

    h = x.reshape(B, -1).astype(jnp.float32)
    h = jnp.pad(h, ((0, 0), (0, Dp - D)))          # lane-pad input (fuses)

    out_dim_p = _round_up(d_out)
    mxu_stats = B >= _MXU_STATS_MIN_B

    # Explicit VMEM budget from the actual resident footprint (+ headroom),
    # clamped to v7x's 64 MiB physical VMEM.
    op_bytes = sum(int(o.size) * o.dtype.itemsize for o in ops)
    max_width = max(int(o.shape[-1]) for o in ops)
    act_bytes = 4 * B * max(max_width, Dp, out_dim_p) * 3   # h, h*h, out
    vmem_limit = int(min(max(op_bytes + act_bytes + (8 << 20), 16 << 20),
                         64 << 20))

    vmem = pl.BlockSpec(memory_space=pltpu.MemorySpace.VMEM)
    y = pl.pallas_call(
        functools.partial(_fused_ae_kernel, n_layers=n_layers,
                          eps=_BN_EPS, mxu_stats=mxu_stats),
        out_shape=jax.ShapeDtypeStruct((B, out_dim_p), jnp.float32),
        in_specs=[vmem] * (1 + 2 * n_layers),
        out_specs=vmem,
        compiler_params=pltpu.CompilerParams(vmem_limit_bytes=vmem_limit),
    )(h, *ops)

    # Drop the padded columns (they hold sigmoid(0)=0.5) and reshape.
    return y[:, :d_out].reshape(-1, *data_size)


def ae_linear_forward(prepared, x, data_size):
    ops, meta = prepared
    return _ae_forward_jit(x, ops, n_layers=meta["n_layers"],
                           d_out=meta["d_out"], data_size=tuple(data_size))


def _ref_layer(h, layer, eps=_BN_EPS):
    h = h @ layer["w"] + layer["b"]
    mean = h.mean(axis=0, keepdims=True)
    var = ((h - mean) ** 2).mean(axis=0, keepdims=True)
    y = (h - mean) * jax.lax.rsqrt(var + eps) * layer["gamma"] + layer["beta"]
    return jnp.maximum(y, 0.0)


def ae_linear_reference(params, x, data_size):
    B = x.shape[0]
    h = x.reshape(B, -1).astype(jnp.float32)
    for layer in list(params["encoder"]) + list(params["decoder"]):
        h = _ref_layer(h, layer)
    return jax.nn.sigmoid(h).reshape(-1, *data_size)


if __name__ == "__main__":
    # Small shapes consistent with the module:
    #   data_size = (4, 16)  ->  flat dim D = 64
    #   hidden_dims (ctor arg) = [32, 16]  ->  after insert: [64, 32, 16]
    data_size = (4, 16)
    hidden_dims = [32, 16]
    hidden_dims.insert(0, data_size[0] * data_size[1])
    elements_list = None  # unused by forward()

    B = 8
    key = jax.random.PRNGKey(0)
    k_params, k_x = jax.random.split(key)

    params = init_ae_linear_params(k_params, data_size, hidden_dims)
    x = jax.random.normal(k_x, (B, *data_size), dtype=jnp.float32)

    # Pad / pack / (optionally) cast parameters ONCE, outside the hot path.
    # use_bf16_matmul=True is the recommended setting for v5e/v6e/v7x at
    # realistic widths; kept False here so the exact-f32 check below holds.
    prepared = prepare_ae_params(params, use_bf16_matmul=False)

    out = jax.block_until_ready(ae_linear_forward(prepared, x, data_size))
    ref = jax.block_until_ready(ae_linear_reference(params, x, data_size))

    assert out.shape == (B, *data_size), out.shape
    assert jnp.allclose(out, ref, atol=1e-5, rtol=1e-5), \
        float(jnp.max(jnp.abs(out - ref)))

    print("KERNEL_OK")
</pallas_src>

<mosaic_0001>
module attributes {stable_mosaic.version = 11 : i64} {
  func.func @_fused_ae_kernel(%arg0: memref<8x128xf32, #tpu.memory_space<vmem>>, %arg1: memref<128x128xf32, #tpu.memory_space<vmem>>, %arg2: memref<2x128xf32, #tpu.memory_space<vmem>>, %arg3: memref<128x128xf32, #tpu.memory_space<vmem>>, %arg4: memref<2x128xf32, #tpu.memory_space<vmem>>, %arg5: memref<128x128xf32, #tpu.memory_space<vmem>>, %arg6: memref<2x128xf32, #tpu.memory_space<vmem>>, %arg7: memref<128x128xf32, #tpu.memory_space<vmem>>, %arg8: memref<2x128xf32, #tpu.memory_space<vmem>>, %arg9: memref<8x128xf32, #tpu.memory_space<vmem>>) attributes {dimension_semantics = [], scalar_prefetch = 0 : i64, scratch_operands = 0 : i64, tpu.core_type = #tpu.core_type<tc>} {
    %c0 = arith.constant 0 : index
    %c0_0 = arith.constant 0 : index
    %0 = vector.load %arg0[%c0, %c0_0] : memref<8x128xf32, #tpu.memory_space<vmem>>, vector<8x128xf32>
    %c0_1 = arith.constant 0 : index
    %c0_2 = arith.constant 0 : index
    %1 = vector.load %arg1[%c0_1, %c0_2] : memref<128x128xf32, #tpu.memory_space<vmem>>, vector<128x128xf32>
    %cst = arith.constant dense<0.000000e+00> : vector<8x128xf32>
    %2 = tpu.matmul %0, %1, %cst {dimension_numbers = #tpu.dot_dimension_numbers<[1], [0], [0], [1], [0, 0, 1, 1], [], []>} : vector<8x128xf32>, vector<128x128xf32>, vector<8x128xf32> -> vector<8x128xf32>
    %cst_3 = arith.constant dense<0.000000e+00> : vector<128xf32>
    %3 = vector.multi_reduction <add>, %2, %cst_3 [0] : vector<8x128xf32> to vector<128xf32>
    %4 = vector.shape_cast %3 : vector<128xf32> to vector<1x128xf32>
    %cst_4 = arith.constant 1.250000e-01 : f32
    %5 = vector.broadcast %cst_4 : f32 to vector<1x128xf32>
    %6 = arith.mulf %4, %5 : vector<1x128xf32>
    %7 = arith.mulf %2, %2 : vector<8x128xf32>
    %cst_5 = arith.constant dense<0.000000e+00> : vector<128xf32>
    %8 = vector.multi_reduction <add>, %7, %cst_5 [0] : vector<8x128xf32> to vector<128xf32>
    %9 = vector.shape_cast %8 : vector<128xf32> to vector<1x128xf32>
    %cst_6 = arith.constant 1.250000e-01 : f32
    %10 = vector.broadcast %cst_6 : f32 to vector<1x128xf32>
    %11 = arith.mulf %9, %10 : vector<1x128xf32>
    %12 = arith.mulf %6, %6 : vector<1x128xf32>
    %13 = arith.subf %11, %12 : vector<1x128xf32>
    %cst_7 = arith.constant 0.000000e+00 : f32
    %14 = vector.broadcast %cst_7 : f32 to vector<1x128xf32>
    %15 = arith.maximumf %13, %14 : vector<1x128xf32>
    %cst_8 = arith.constant 9.99999974E-6 : f32
    %16 = vector.broadcast %cst_8 : f32 to vector<1x128xf32>
    %17 = arith.addf %15, %16 : vector<1x128xf32>
    %18 = math.rsqrt %17 : vector<1x128xf32>
    %c0_9 = arith.constant 0 : index
    %c0_10 = arith.constant 0 : index
    %19 = vector.load %arg2[%c0_9, %c0_10] : memref<2x128xf32, #tpu.memory_space<vmem>>, vector<2x128xf32>
    %20 = vector.extract_strided_slice %19 {offsets = [0, 0], sizes = [1, 128], strides = [1, 1]} : vector<2x128xf32> to vector<1x128xf32>
    %21 = arith.mulf %20, %18 : vector<1x128xf32>
    %22 = vector.extract_strided_slice %19 {offsets = [1, 0], sizes = [1, 128], strides = [1, 1]} : vector<2x128xf32> to vector<1x128xf32>
    %23 = arith.mulf %6, %21 : vector<1x128xf32>
    %24 = arith.subf %22, %23 : vector<1x128xf32>
    %25 = vector.broadcast %21 : vector<1x128xf32> to vector<8x128xf32>
    %26 = arith.mulf %2, %25 : vector<8x128xf32>
    %27 = vector.broadcast %24 : vector<1x128xf32> to vector<8x128xf32>
    %28 = arith.addf %26, %27 : vector<8x128xf32>
    %cst_11 = arith.constant 0.000000e+00 : f32
    %29 = vector.broadcast %cst_11 : f32 to vector<8x128xf32>
    %30 = arith.maximumf %28, %29 : vector<8x128xf32>
    %c0_12 = arith.constant 0 : index
    %c0_13 = arith.constant 0 : index
    %31 = vector.load %arg3[%c0_12, %c0_13] : memref<128x128xf32, #tpu.memory_space<vmem>>, vector<128x128xf32>
    %cst_14 = arith.constant dense<0.000000e+00> : vector<8x128xf32>
    %32 = tpu.matmul %30, %31, %cst_14 {dimension_numbers = #tpu.dot_dimension_numbers<[1], [0], [0], [1], [0, 0, 1, 1], [], []>} : vector<8x128xf32>, vector<128x128xf32>, vector<8x128xf32> -> vector<8x128xf32>
    %cst_15 = arith.constant dense<0.000000e+00> : vector<128xf32>
    %33 = vector.multi_reduction <add>, %32, %cst_15 [0] : vector<8x128xf32> to vector<128xf32>
    %34 = vector.shape_cast %33 : vector<128xf32> to vector<1x128xf32>
    %cst_16 = arith.constant 1.250000e-01 : f32
    %35 = vector.broadcast %cst_16 : f32 to vector<1x128xf32>
    %36 = arith.mulf %34, %35 : vector<1x128xf32>
    %37 = arith.mulf %32, %32 : vector<8x128xf32>
    %cst_17 = arith.constant dense<0.000000e+00> : vector<128xf32>
    %38 = vector.multi_reduction <add>, %37, %cst_17 [0] : vector<8x128xf32> to vector<128xf32>
    %39 = vector.shape_cast %38 : vector<128xf32> to vector<1x128xf32>
    %cst_18 = arith.constant 1.250000e-01 : f32
    %40 = vector.broadcast %cst_18 : f32 to vector<1x128xf32>
    %41 = arith.mulf %39, %40 : vector<1x128xf32>
    %42 = arith.mulf %36, %36 : vector<1x128xf32>
    %43 = arith.subf %41, %42 : vector<1x128xf32>
    %cst_19 = arith.constant 0.000000e+00 : f32
    %44 = vector.broadcast %cst_19 : f32 to vector<1x128xf32>
    %45 = arith.maximumf %43, %44 : vector<1x128xf32>
    %cst_20 = arith.constant 9.99999974E-6 : f32
    %46 = vector.broadcast %cst_20 : f32 to vector<1x128xf32>
    %47 = arith.addf %45, %46 : vector<1x128xf32>
    %48 = math.rsqrt %47 : vector<1x128xf32>
    %c0_21 = arith.constant 0 : index
    %c0_22 = arith.constant 0 : index
    %49 = vector.load %arg4[%c0_21, %c0_22] : memref<2x128xf32, #tpu.memory_space<vmem>>, vector<2x128xf32>
    %50 = vector.extract_strided_slice %49 {offsets = [0, 0], sizes = [1, 128], strides = [1, 1]} : vector<2x128xf32> to vector<1x128xf32>
    %51 = arith.mulf %50, %48 : vector<1x128xf32>
    %52 = vector.extract_strided_slice %49 {offsets = [1, 0], sizes = [1, 128], strides = [1, 1]} : vector<2x128xf32> to vector<1x128xf32>
    %53 = arith.mulf %36, %51 : vector<1x128xf32>
    %54 = arith.subf %52, %53 : vector<1x128xf32>
    %55 = vector.broadcast %51 : vector<1x128xf32> to vector<8x128xf32>
    %56 = arith.mulf %32, %55 : vector<8x128xf32>
    %57 = vector.broadcast %54 : vector<1x128xf32> to vector<8x128xf32>
    %58 = arith.addf %56, %57 : vector<8x128xf32>
    %cst_23 = arith.constant 0.000000e+00 : f32
    %59 = vector.broadcast %cst_23 : f32 to vector<8x128xf32>
    %60 = arith.maximumf %58, %59 : vector<8x128xf32>
    %c0_24 = arith.constant 0 : index
    %c0_25 = arith.constant 0 : index
    %61 = vector.load %arg5[%c0_24, %c0_25] : memref<128x128xf32, #tpu.memory_space<vmem>>, vector<128x128xf32>
    %cst_26 = arith.constant dense<0.000000e+00> : vector<8x128xf32>
    %62 = tpu.matmul %60, %61, %cst_26 {dimension_numbers = #tpu.dot_dimension_numbers<[1], [0], [0], [1], [0, 0, 1, 1], [], []>} : vector<8x128xf32>, vector<128x128xf32>, vector<8x128xf32> -> vector<8x128xf32>
    %cst_27 = arith.constant dense<0.000000e+00> : vector<128xf32>
    %63 = vector.multi_reduction <add>, %62, %cst_27 [0] : vector<8x128xf32> to vector<128xf32>
    %64 = vector.shape_cast %63 : vector<128xf32> to vector<1x128xf32>
    %cst_28 = arith.constant 1.250000e-01 : f32
    %65 = vector.broadcast %cst_28 : f32 to vector<1x128xf32>
    %66 = arith.mulf %64, %65 : vector<1x128xf32>
    %67 = arith.mulf %62, %62 : vector<8x128xf32>
    %cst_29 = arith.constant dense<0.000000e+00> : vector<128xf32>
    %68 = vector.multi_reduction <add>, %67, %cst_29 [0] : vector<8x128xf32> to vector<128xf32>
    %69 = vector.shape_cast %68 : vector<128xf32> to vector<1x128xf32>
    %cst_30 = arith.constant 1.250000e-01 : f32
    %70 = vector.broadcast %cst_30 : f32 to vector<1x128xf32>
    %71 = arith.mulf %69, %70 : vector<1x128xf32>
    %72 = arith.mulf %66, %66 : vector<1x128xf32>
    %73 = arith.subf %71, %72 : vector<1x128xf32>
    %cst_31 = arith.constant 0.000000e+00 : f32
    %74 = vector.broadcast %cst_31 : f32 to vector<1x128xf32>
    %75 = arith.maximumf %73, %74 : vector<1x128xf32>
    %cst_32 = arith.constant 9.99999974E-6 : f32
    %76 = vector.broadcast %cst_32 : f32 to vector<1x128xf32>
    %77 = arith.addf %75, %76 : vector<1x128xf32>
    %78 = math.rsqrt %77 : vector<1x128xf32>
    %c0_33 = arith.constant 0 : index
    %c0_34 = arith.constant 0 : index
    %79 = vector.load %arg6[%c0_33, %c0_34] : memref<2x128xf32, #tpu.memory_space<vmem>>, vector<2x128xf32>
    %80 = vector.extract_strided_slice %79 {offsets = [0, 0], sizes = [1, 128], strides = [1, 1]} : vector<2x128xf32> to vector<1x128xf32>
    %81 = arith.mulf %80, %78 : vector<1x128xf32>
    %82 = vector.extract_strided_slice %79 {offsets = [1, 0], sizes = [1, 128], strides = [1, 1]} : vector<2x128xf32> to vector<1x128xf32>
    %83 = arith.mulf %66, %81 : vector<1x128xf32>
    %84 = arith.subf %82, %83 : vector<1x128xf32>
    %85 = vector.broadcast %81 : vector<1x128xf32> to vector<8x128xf32>
    %86 = arith.mulf %62, %85 : vector<8x128xf32>
    %87 = vector.broadcast %84 : vector<1x128xf32> to vector<8x128xf32>
    %88 = arith.addf %86, %87 : vector<8x128xf32>
    %cst_35 = arith.constant 0.000000e+00 : f32
    %89 = vector.broadcast %cst_35 : f32 to vector<8x128xf32>
    %90 = arith.maximumf %88, %89 : vector<8x128xf32>
    %c0_36 = arith.constant 0 : index
    %c0_37 = arith.constant 0 : index
    %91 = vector.load %arg7[%c0_36, %c0_37] : memref<128x128xf32, #tpu.memory_space<vmem>>, vector<128x128xf32>
    %cst_38 = arith.constant dense<0.000000e+00> : vector<8x128xf32>
    %92 = tpu.matmul %90, %91, %cst_38 {dimension_numbers = #tpu.dot_dimension_numbers<[1], [0], [0], [1], [0, 0, 1, 1], [], []>} : vector<8x128xf32>, vector<128x128xf32>, vector<8x128xf32> -> vector<8x128xf32>
    %cst_39 = arith.constant dense<0.000000e+00> : vector<128xf32>
    %93 = vector.multi_reduction <add>, %92, %cst_39 [0] : vector<8x128xf32> to vector<128xf32>
    %94 = vector.shape_cast %93 : vector<128xf32> to vector<1x128xf32>
    %cst_40 = arith.constant 1.250000e-01 : f32
    %95 = vector.broadcast %cst_40 : f32 to vector<1x128xf32>
    %96 = arith.mulf %94, %95 : vector<1x128xf32>
    %97 = arith.mulf %92, %92 : vector<8x128xf32>
    %cst_41 = arith.constant dense<0.000000e+00> : vector<128xf32>
    %98 = vector.multi_reduction <add>, %97, %cst_41 [0] : vector<8x128xf32> to vector<128xf32>
    %99 = vector.shape_cast %98 : vector<128xf32> to vector<1x128xf32>
    %cst_42 = arith.constant 1.250000e-01 : f32
    %100 = vector.broadcast %cst_42 : f32 to vector<1x128xf32>
    %101 = arith.mulf %99, %100 : vector<1x128xf32>
    %102 = arith.mulf %96, %96 : vector<1x128xf32>
    %103 = arith.subf %101, %102 : vector<1x128xf32>
    %cst_43 = arith.constant 0.000000e+00 : f32
    %104 = vector.broadcast %cst_43 : f32 to vector<1x128xf32>
    %105 = arith.maximumf %103, %104 : vector<1x128xf32>
    %cst_44 = arith.constant 9.99999974E-6 : f32
    %106 = vector.broadcast %cst_44 : f32 to vector<1x128xf32>
    %107 = arith.addf %105, %106 : vector<1x128xf32>
    %108 = math.rsqrt %107 : vector<1x128xf32>
    %c0_45 = arith.constant 0 : index
    %c0_46 = arith.constant 0 : index
    %109 = vector.load %arg8[%c0_45, %c0_46] : memref<2x128xf32, #tpu.memory_space<vmem>>, vector<2x128xf32>
    %110 = vector.extract_strided_slice %109 {offsets = [0, 0], sizes = [1, 128], strides = [1, 1]} : vector<2x128xf32> to vector<1x128xf32>
    %111 = arith.mulf %110, %108 : vector<1x128xf32>
    %112 = vector.extract_strided_slice %109 {offsets = [1, 0], sizes = [1, 128], strides = [1, 1]} : vector<2x128xf32> to vector<1x128xf32>
    %113 = arith.mulf %96, %111 : vector<1x128xf32>
    %114 = arith.subf %112, %113 : vector<1x128xf32>
    %115 = vector.broadcast %111 : vector<1x128xf32> to vector<8x128xf32>
    %116 = arith.mulf %92, %115 : vector<8x128xf32>
    %117 = vector.broadcast %114 : vector<1x128xf32> to vector<8x128xf32>
    %118 = arith.addf %116, %117 : vector<8x128xf32>
    %cst_47 = arith.constant 0.000000e+00 : f32
    %119 = vector.broadcast %cst_47 : f32 to vector<8x128xf32>
    %120 = arith.maximumf %118, %119 : vector<8x128xf32>
    %121 = arith.negf %120 : vector<8x128xf32>
    %122 = math.exp %121 : vector<8x128xf32>
    %cst_48 = arith.constant 1.000000e+00 : f32
    %123 = vector.broadcast %cst_48 : f32 to vector<8x128xf32>
    %124 = arith.addf %123, %122 : vector<8x128xf32>
    %125 = arith.divf %123, %124 : vector<8x128xf32>
    %c0_49 = arith.constant 0 : index
    %c0_50 = arith.constant 0 : index
    %126 = vector.load %arg9[%c0_49, %c0_50] : memref<8x128xf32, #tpu.memory_space<vmem>>, vector<8x128xf32>
    tpu.vector_store %arg9[%c0_49, %c0_50], %125 {strides = array<i32>} : memref<8x128xf32, #tpu.memory_space<vmem>>, vector<8x128xf32>,
    return
  }
}

</mosaic_0001>

<llo_original>
// kernel: _ae_forward_jit.1
$region0: #{_ae_forward_jit.1}
  #allocation0 [shape = 'u32[]', space=smem, size = 0x4, offset = 0x4, fixed_abs, tag = 'smem constant byte address 0x4 - core index']
  #allocation1 [shape = 'u32[72,128]{1,0:T(1,128)}', space=vmem, size = 0x9000, scoped, tag = 'internal scratch']
  %s0 = inlined_call_operand.vmem [shape: f32[8,128], index: 0, kind: input, shape index: {}]
  %s1 = inlined_call_operand.hbm [shape: f32[128,128], index: 1, kind: input, shape index: {}]
  %s2 = inlined_call_operand.vmem [shape: f32[2,128], index: 2, kind: input, shape index: {}]
  %s3 = inlined_call_operand.hbm [shape: f32[128,128], index: 3, kind: input, shape index: {}]
  %s4 = inlined_call_operand.vmem [shape: f32[2,128], index: 4, kind: input, shape index: {}]
  %s5 = inlined_call_operand.hbm [shape: f32[128,128], index: 5, kind: input, shape index: {}]
  %s6 = inlined_call_operand.vmem [shape: f32[2,128], index: 6, kind: input, shape index: {}]
  %s7 = inlined_call_operand.hbm [shape: f32[128,128], index: 7, kind: input, shape index: {}]
  %s8 = inlined_call_operand.vmem [shape: f32[2,128], index: 8, kind: input, shape index: {}]
  %s9 = inlined_call_operand.vmem [shape: f32[8,128], index: 9, kind: output, shape index: {}]
  %s10 = sld [smem:[#allocation0]]
  $region62: #{_ae_forward_jit.1} parent=0
    _
  %s12 = ssub.s32 1, %s10
  %s13 = scalar_select 0, %s12, %s10
  $region1: #{_ae_forward_jit.1} parent=0
    #allocation2 [shape = 'u8[65536]{0}', space=vmem, size = 0x10000, scoped, tag = 'input window, operand 1, single buffered']
    #allocation3 [shape = 's32[1]{0}', space=sflag, size = 0x4, scoped, tag = 'scoped memory for _ae_forward_jit.1']
    #allocation4 [shape = 'u8[65536]{0}', space=vmem, size = 0x10000, scoped, tag = 'input window, operand 3, single buffered']
    #allocation5 [shape = 's32[1]{0}', space=sflag, size = 0x4, scoped, tag = 'scoped memory for _ae_forward_jit.1']
    #allocation6 [shape = 'u8[65536]{0}', space=vmem, size = 0x10000, scoped, tag = 'input window, operand 5, single buffered']
    #allocation7 [shape = 'u8[65536]{0}', space=vmem, size = 0x10000, scoped, tag = 'input window, operand 7, single buffered']
    #allocation8 [shape = 's32[1]{0}', space=sflag, size = 0x4, scoped, tag = 'scoped memory for _ae_forward_jit.1']
    %14 = vsyncpa [#allocation3], 0
    %15 = vsyncpa [#allocation5], 0
    %16 = vsyncpa [#allocation8], 0
    // Predicated region
    $region2: #{_ae_forward_jit.1} parent=1 // pred_check
      _
    $region3: #{_ae_forward_jit.1} parent=1 // pred_check_branch
      %18 = sbr.rel (0) target = $region5
    $region4: #{_ae_forward_jit.1} parent=1 // pred_region
      _
    $region5: #{_ae_forward_jit.1} parent=1 // pred_fallthru
      _
    // Predicated region
    $region6: #{_ae_forward_jit.1} parent=1 // pred_check
      _
    $region7: #{_ae_forward_jit.1} parent=1 // pred_check_branch
      %20 = sbr.rel (0) target = $region9
    $region8: #{_ae_forward_jit.1} parent=1 // pred_region
      %22 = vsyncadd [#allocation3], 0
      %s23 = sshll.u32 %s1, 4
      %s24 = int_to_ptr.hbm [resolvable:$true] %s23
      %s25 = sshll.u32 [#allocation2], 4
      %s26 = int_to_ptr.vmem [resolvable:$true] %s25
      %31 = dma.hbm_to_vmem [thread:$0]  %s24, 2048, %s26, [#allocation3], 128, 128, 8
    $region9: #{_ae_forward_jit.1} parent=1 // pred_fallthru
      _
    // Predicated region
    $region10: #{_ae_forward_jit.1} parent=1 // pred_check
      _
    $region11: #{_ae_forward_jit.1} parent=1 // pred_check_branch
      %33 = sbr.rel (0) target = $region13
    $region12: #{_ae_forward_jit.1} parent=1 // pred_region
      _
    $region13: #{_ae_forward_jit.1} parent=1 // pred_fallthru
      _
    // Predicated region
    $region14: #{_ae_forward_jit.1} parent=1 // pred_check
      _
    $region15: #{_ae_forward_jit.1} parent=1 // pred_check_branch
      %35 = sbr.rel (0) target = $region17
    $region16: #{_ae_forward_jit.1} parent=1 // pred_region
      %37 = vsyncadd [#allocation5], 0
      %s38 = sshll.u32 %s3, 4
      %s39 = int_to_ptr.hbm [resolvable:$true] %s38
      %s40 = sshll.u32 [#allocation4], 4
      %s41 = int_to_ptr.vmem [resolvable:$true] %s40
      %46 = dma.hbm_to_vmem [thread:$0]  %s39, 2048, %s41, [#allocation5], 128, 128, 8
    $region17: #{_ae_forward_jit.1} parent=1 // pred_fallthru
      _
    // Predicated region
    $region18: #{_ae_forward_jit.1} parent=1 // pred_check
      _
    $region19: #{_ae_forward_jit.1} parent=1 // pred_check_branch
      %48 = sbr.rel (0) target = $region21
    $region20: #{_ae_forward_jit.1} parent=1 // pred_region
      _
    $region21: #{_ae_forward_jit.1} parent=1 // pred_fallthru
      _
    // Predicated region
    $region22: #{_ae_forward_jit.1} parent=1 // pred_check
      _
    $region23: #{_ae_forward_jit.1} parent=1 // pred_check_branch
      %50 = sbr.rel (0) target = $region25
    $region24: #{_ae_forward_jit.1} parent=1 // pred_region
      %52 = vsyncadd [#allocation5], 0
      %s53 = sshll.u32 %s5, 4
      %s54 = int_to_ptr.hbm [resolvable:$true] %s53
      %s55 = sshll.u32 [#allocation6], 4
      %s56 = int_to_ptr.vmem [resolvable:$true] %s55
      %61 = dma.hbm_to_vmem [thread:$0]  %s54, 2048, %s56, [#allocation5], 128, 128, 8
    $region25: #{_ae_forward_jit.1} parent=1 // pred_fallthru
      _
    // Predicated region
    $region26: #{_ae_forward_jit.1} parent=1 // pred_check
      _
    $region27: #{_ae_forward_jit.1} parent=1 // pred_check_branch
      %63 = sbr.rel (0) target = $region29
    $region28: #{_ae_forward_jit.1} parent=1 // pred_region
      _
    $region29: #{_ae_forward_jit.1} parent=1 // pred_fallthru
      _
    // Predicated region
    $region30: #{_ae_forward_jit.1} parent=1 // pred_check
      _
    $region31: #{_ae_forward_jit.1} parent=1 // pred_check_branch
      %65 = sbr.rel (0) target = $region33
    $region32: #{_ae_forward_jit.1} parent=1 // pred_region
      %67 = vsyncadd [#allocation8], 0
      %s68 = sshll.u32 %s7, 4
      %s69 = int_to_ptr.hbm [resolvable:$true] %s68
      %s70 = sshll.u32 [#allocation7], 4
      %s71 = int_to_ptr.vmem [resolvable:$true] %s70
      %76 = dma.hbm_to_vmem [thread:$0]  %s69, 2048, %s71, [#allocation8], 128, 128, 8
    $region33: #{_ae_forward_jit.1} parent=1 // pred_fallthru
      _
    // Predicated region
    $region34: #{_ae_forward_jit.1} parent=1 // pred_check
      _
    $region35: #{_ae_forward_jit.1} parent=1 // pred_check_branch
      %78 = sbr.rel (0) target = $region37
    $region36: #{_ae_forward_jit.1} parent=1 // pred_region
      _
    $region37: #{_ae_forward_jit.1} parent=1 // pred_fallthru
      _
    // Predicated region
    $region38: #{_ae_forward_jit.1} parent=1 // pred_check
      _
    $region39: #{_ae_forward_jit.1} parent=1 // pred_check_branch
      %80 = sbr.rel (0) target = $region41
    $region40: #{_ae_forward_jit.1} parent=1 // pred_region
      %82 = dma.done [#allocation3], 2048
    $region41: #{_ae_forward_jit.1} parent=1 // pred_fallthru
      _
    // Predicated region
    $region42: #{_ae_forward_jit.1} parent=1 // pred_check
      _
    $region43: #{_ae_forward_jit.1} parent=1 // pred_check_branch
      %84 = sbr.rel (0) target = $region45
    $region44: #{_ae_forward_jit.1} parent=1 // pred_region
      %86 = dma.done [#allocation5], 2048
    $region45: #{_ae_forward_jit.1} parent=1 // pred_fallthru
      _
    // Predicated region
    $region46: #{_ae_forward_jit.1} parent=1 // pred_check
      _
    $region47: #{_ae_forward_jit.1} parent=1 // pred_check_branch
      %88 = sbr.rel (0) target = $region49
    $region48: #{_ae_forward_jit.1} parent=1 // pred_region
      %90 = dma.done [#allocation5], 2048
    $region49: #{_ae_forward_jit.1} parent=1 // pred_fallthru
      _
    // Predicated region
    $region50: #{_ae_forward_jit.1} parent=1 // pred_check
      _
    $region51: #{_ae_forward_jit.1} parent=1 // pred_check_branch
      %92 = sbr.rel (0) target = $region53
    $region52: #{_ae_forward_jit.1} parent=1 // pred_region
      %94 = dma.done [#allocation8], 2048
    $region53: #{_ae_forward_jit.1} parent=1 // pred_fallthru
      _
    %v95 = vld [vmem:[%s0] sm:$0xff]
    %v96 = vld [vmem:[#allocation2] sm:$0xff]
    %v97 = vld [vmem:[#allocation2 + $0x8] sm:$0xff]
    %v98 = vld [vmem:[#allocation2 + $0x10] sm:$0xff]
    %v99 = vld [vmem:[#allocation2 + $0x18] sm:$0xff]
    %v100 = vld [vmem:[#allocation2 + $0x20] sm:$0xff]
    %v101 = vld [vmem:[#allocation2 + $0x28] sm:$0xff]
    %v102 = vld [vmem:[#allocation2 + $0x30] sm:$0xff]
    %v103 = vld [vmem:[#allocation2 + $0x38] sm:$0xff]
    %v104 = vld [vmem:[#allocation2 + $0x40] sm:$0xff]
    %v105 = vld [vmem:[#allocation2 + $0x48] sm:$0xff]
    %v106 = vld [vmem:[#allocation2 + $0x50] sm:$0xff]
    %v107 = vld [vmem:[#allocation2 + $0x58] sm:$0xff]
    %v108 = vld [vmem:[#allocation2 + $0x60] sm:$0xff]
    %v109 = vld [vmem:[#allocation2 + $0x68] sm:$0xff]
    %v110 = vld [vmem:[#allocation2 + $0x70] sm:$0xff]
    %v111 = vld [vmem:[#allocation2 + $0x78] sm:$0xff]
    %112 = vmatpush.msra.mxu0 %v111
    %113 = vmatpush.msra.mxu0 %v110
    %114 = vmatpush.msra.mxu0 %v109
    %115 = vmatpush.msra.mxu0 %v108
    %116 = vmatpush.msra.mxu0 %v107
    %117 = vmatpush.msra.mxu0 %v106
    %118 = vmatpush.msra.mxu0 %v105
    %119 = vmatpush.msra.mxu0 %v104
    %120 = vmatpush.msra.mxu0 %v103
    %121 = vmatpush.msra.mxu0 %v102
    %122 = vmatpush.msra.mxu0 %v101
    %123 = vmatpush.msra.mxu0 %v100
    %124 = vmatpush.msra.mxu0 %v99
    %125 = vmatpush.msra.mxu0 %v98
    %126 = vmatpush.msra.mxu0 %v97
    %127 = vmatpush.msra.mxu0 %v96
    %128 = vmatmul.f32.gmra.mxu0 %v95
    %v129 = vpop.f32.mrf.mxu0
    %v130 = vadd.f32 0.0, %v129
    %131 = vdwg.mxu0
    %v132 = vrot.slane %v130, 4
    %v133 = vadd.f32 %v130, %v132
    %v134 = vrot.slane %v133, 2
    %v135 = vadd.f32 %v133, %v134
    %v136 = vrot.slane %v135, 1
    %v137 = vadd.f32 %v135, %v136
    %v138 = vmul.f32 %v137, 0.125
    %v139 = vmul.f32 %v130, %v130
    %v140 = vrot.slane %v139, 4
    %v141 = vadd.f32 %v139, %v140
    %v142 = vrot.slane %v141, 2
    %v143 = vadd.f32 %v141, %v142
    %v144 = vrot.slane %v143, 1
    %v145 = vadd.f32 %v143, %v144
    %v146 = vmul.f32 %v145, 0.125
    %v147 = vmul.f32 %v138, %v138
    %v148 = vsub.f32 %v146, %v147
    %v149 = vmax.f32 %v148, 0.0
    %v150 = vadd.f32 %v149, 1e-05
    %v151 = vrsqrt.pop %v150
    %v152 = vmul.f32 %v151, %v150
    %v153 = vmul.f32 %v152, %v151
    %v154 = vmul.f32 0.5, %v153
    %v155 = vsub.f32 1.5, %v154
    %v156 = vmul.f32 %v151, %v155
    %vm157 = vweird.f32 %v150
    %vm158 = vweird.f32 %v151
    %vm159 = vmor %vm157, %vm158
    %v160 = vsel %vm159, %v151, %v156
    %v161 = vld [vmem:[%s2] sm:$0x3]
    %v162 = vmul.f32 %v161, %v160
    %v163 = vmul.f32 %v138, %v162
    %v165 = vrot.slane %v163, 7
    %v167 = vsub.f32 %v161, %v165
    %v168 = vperm.slane %v162, 0
    %v169 = vmul.f32 %v130, %v168
    %v170 = vperm.slane %v167, 1
    %v171 = vadd.f32 %v169, %v170
    %v172 = vmax.f32 %v171, 0.0
    %v173 = vld [vmem:[#allocation4] sm:$0xff]
    %v174 = vld [vmem:[#allocation4 + $0x8] sm:$0xff]
    %v175 = vld [vmem:[#allocation4 + $0x10] sm:$0xff]
    %v176 = vld [vmem:[#allocation4 + $0x18] sm:$0xff]
    %v177 = vld [vmem:[#allocation4 + $0x20] sm:$0xff]
    %v178 = vld [vmem:[#allocation4 + $0x28] sm:$0xff]
    %v179 = vld [vmem:[#allocation4 + $0x30] sm:$0xff]
    %v180 = vld [vmem:[#allocation4 + $0x38] sm:$0xff]
    %v181 = vld [vmem:[#allocation4 + $0x40] sm:$0xff]
    %v182 = vld [vmem:[#allocation4 + $0x48] sm:$0xff]
    %v183 = vld [vmem:[#allocation4 + $0x50] sm:$0xff]
    %v184 = vld [vmem:[#allocation4 + $0x58] sm:$0xff]
    %v185 = vld [vmem:[#allocation4 + $0x60] sm:$0xff]
    %v186 = vld [vmem:[#allocation4 + $0x68] sm:$0xff]
    %v187 = vld [vmem:[#allocation4 + $0x70] sm:$0xff]
    %v188 = vld [vmem:[#allocation4 + $0x78] sm:$0xff]
    %189 = vmatpush.msra.mxu0 %v188
    %190 = vmatpush.msra.mxu0 %v187
    %191 = vmatpush.msra.mxu0 %v186
    %192 = vmatpush.msra.mxu0 %v185
    %193 = vmatpush.msra.mxu0 %v184
    %194 = vmatpush.msra.mxu0 %v183
    %195 = vmatpush.msra.mxu0 %v182
    %196 = vmatpush.msra.mxu0 %v181
    %197 = vmatpush.msra.mxu0 %v180
    %198 = vmatpush.msra.mxu0 %v179
    %199 = vmatpush.msra.mxu0 %v178
    %200 = vmatpush.msra.mxu0 %v177
    %201 = vmatpush.msra.mxu0 %v176
    %202 = vmatpush.msra.mxu0 %v175
    %203 = vmatpush.msra.mxu0 %v174
    %204 = vmatpush.msra.mxu0 %v173
    %205 = vmatmul.f32.gmra.mxu0 %v172
    %v206 = vpop.f32.mrf.mxu0
    %v207 = vadd.f32 0.0, %v206
    %208 = vdwg.mxu0
    %v209 = vrot.slane %v207, 4
    %v210 = vadd.f32 %v207, %v209
    %v211 = vrot.slane %v210, 2
    %v212 = vadd.f32 %v210, %v211
    %v213 = vrot.slane %v212, 1
    %v214 = vadd.f32 %v212, %v213
    %v215 = vmul.f32 %v214, 0.125
    %v216 = vmul.f32 %v207, %v207
    %v217 = vrot.slane %v216, 4
    %v218 = vadd.f32 %v216, %v217
    %v219 = vrot.slane %v218, 2
    %v220 = vadd.f32 %v218, %v219
    %v221 = vrot.slane %v220, 1
    %v222 = vadd.f32 %v220, %v221
    %v223 = vmul.f32 %v222, 0.125
    %v224 = vmul.f32 %v215, %v215
    %v225 = vsub.f32 %v223, %v224
    %v226 = vmax.f32 %v225, 0.0
    %v227 = vadd.f32 %v226, 1e-05
    %v228 = vrsqrt.pop %v227
    %v229 = vmul.f32 %v228, %v227
    %v230 = vmul.f32 %v229, %v228
    %v231 = vmul.f32 0.5, %v230
    %v232 = vsub.f32 1.5, %v231
    %v233 = vmul.f32 %v228, %v232
    %vm234 = vweird.f32 %v227
    %vm235 = vweird.f32 %v228
    %vm236 = vmor %vm234, %vm235
    %v237 = vsel %vm236, %v228, %v233
    %v238 = vld [vmem:[%s4] sm:$0x3]
    %v239 = vmul.f32 %v238, %v237
    %v240 = vmul.f32 %v215, %v239
    %v242 = vrot.slane %v240, 7
    %v244 = vsub.f32 %v238, %v242
    %v245 = vperm.slane %v239, 0
    %v246 = vmul.f32 %v207, %v245
    %v247 = vperm.slane %v244, 1
    %v248 = vadd.f32 %v246, %v247
    %v249 = vmax.f32 %v248, 0.0
    %v250 = vld [vmem:[#allocation6] sm:$0xff]
    %v251 = vld [vmem:[#allocation6 + $0x8] sm:$0xff]
    %v252 = vld [vmem:[#allocation6 + $0x10] sm:$0xff]
    %v253 = vld [vmem:[#allocation6 + $0x18] sm:$0xff]
    %v254 = vld [vmem:[#allocation6 + $0x20] sm:$0xff]
    %v255 = vld [vmem:[#allocation6 + $0x28] sm:$0xff]
    %v256 = vld [vmem:[#allocation6 + $0x30] sm:$0xff]
    %v257 = vld [vmem:[#allocation6 + $0x38] sm:$0xff]
    %v258 = vld [vmem:[#allocation6 + $0x40] sm:$0xff]
    %v259 = vld [vmem:[#allocation6 + $0x48] sm:$0xff]
    %v260 = vld [vmem:[#allocation6 + $0x50] sm:$0xff]
    %v261 = vld [vmem:[#allocation6 + $0x58] sm:$0xff]
    %v262 = vld [vmem:[#allocation6 + $0x60] sm:$0xff]
    %v263 = vld [vmem:[#allocation6 + $0x68] sm:$0xff]
    %v264 = vld [vmem:[#allocation6 + $0x70] sm:$0xff]
    %v265 = vld [vmem:[#allocation6 + $0x78] sm:$0xff]
    %266 = vmatpush.msra.mxu0 %v265
    %267 = vmatpush.msra.mxu0 %v264
    %268 = vmatpush.msra.mxu0 %v263
    %269 = vmatpush.msra.mxu0 %v262
    %270 = vmatpush.msra.mxu0 %v261
    %271 = vmatpush.msra.mxu0 %v260
    %272 = vmatpush.msra.mxu0 %v259
    %273 = vmatpush.msra.mxu0 %v258
    %274 = vmatpush.msra.mxu0 %v257
    %275 = vmatpush.msra.mxu0 %v256
    %276 = vmatpush.msra.mxu0 %v255
    %277 = vmatpush.msra.mxu0 %v254
    %278 = vmatpush.msra.mxu0 %v253
    %279 = vmatpush.msra.mxu0 %v252
    %280 = vmatpush.msra.mxu0 %v251
    %281 = vmatpush.msra.mxu0 %v250
    %282 = vmatmul.f32.gmra.mxu0 %v249
    %v283 = vpop.f32.mrf.mxu0
    %v284 = vadd.f32 0.0, %v283
    %285 = vdwg.mxu0
    %v286 = vrot.slane %v284, 4
    %v287 = vadd.f32 %v284, %v286
    %v288 = vrot.slane %v287, 2
    %v289 = vadd.f32 %v287, %v288
    %v290 = vrot.slane %v289, 1
    %v291 = vadd.f32 %v289, %v290
    %v292 = vmul.f32 %v291, 0.125
    %v293 = vmul.f32 %v284, %v284
    %v294 = vrot.slane %v293, 4
    %v295 = vadd.f32 %v293, %v294
    %v296 = vrot.slane %v295, 2
    %v297 = vadd.f32 %v295, %v296
    %v298 = vrot.slane %v297, 1
    %v299 = vadd.f32 %v297, %v298
    %v300 = vmul.f32 %v299, 0.125
    %v301 = vmul.f32 %v292, %v292
    %v302 = vsub.f32 %v300, %v301
    %v303 = vmax.f32 %v302, 0.0
    %v304 = vadd.f32 %v303, 1e-05
    %v305 = vrsqrt.pop %v304
    %v306 = vmul.f32 %v305, %v304
    %v307 = vmul.f32 %v306, %v305
    %v308 = vmul.f32 0.5, %v307
    %v309 = vsub.f32 1.5, %v308
    %v310 = vmul.f32 %v305, %v309
    %vm311 = vweird.f32 %v304
    %vm312 = vweird.f32 %v305
    %vm313 = vmor %vm311, %vm312
    %v314 = vsel %vm313, %v305, %v310
    %v315 = vld [vmem:[%s6] sm:$0x3]
    %v316 = vmul.f32 %v315, %v314
    %v317 = vmul.f32 %v292, %v316
    %v319 = vrot.slane %v317, 7
    %v321 = vsub.f32 %v315, %v319
    %v322 = vperm.slane %v316, 0
    %v323 = vmul.f32 %v284, %v322
    %v324 = vperm.slane %v321, 1
    %v325 = vadd.f32 %v323, %v324
    %v326 = vmax.f32 %v325, 0.0
    %v327 = vld [vmem:[#allocation7] sm:$0xff]
    %v328 = vld [vmem:[#allocation7 + $0x8] sm:$0xff]
    %v329 = vld [vmem:[#allocation7 + $0x10] sm:$0xff]
    %v330 = vld [vmem:[#allocation7 + $0x18] sm:$0xff]
    %v331 = vld [vmem:[#allocation7 + $0x20] sm:$0xff]
    %v332 = vld [vmem:[#allocation7 + $0x28] sm:$0xff]
    %v333 = vld [vmem:[#allocation7 + $0x30] sm:$0xff]
    %v334 = vld [vmem:[#allocation7 + $0x38] sm:$0xff]
    %v335 = vld [vmem:[#allocation7 + $0x40] sm:$0xff]
    %v336 = vld [vmem:[#allocation7 + $0x48] sm:$0xff]
    %v337 = vld [vmem:[#allocation7 + $0x50] sm:$0xff]
    %v338 = vld [vmem:[#allocation7 + $0x58] sm:$0xff]
    %v339 = vld [vmem:[#allocation7 + $0x60] sm:$0xff]
    %v340 = vld [vmem:[#allocation7 + $0x68] sm:$0xff]
    %v341 = vld [vmem:[#allocation7 + $0x70] sm:$0xff]
    %v342 = vld [vmem:[#allocation7 + $0x78] sm:$0xff]
    %343 = vmatpush.msra.mxu0 %v342
    %344 = vmatpush.msra.mxu0 %v341
    %345 = vmatpush.msra.mxu0 %v340
    %346 = vmatpush.msra.mxu0 %v339
    %347 = vmatpush.msra.mxu0 %v338
    %348 = vmatpush.msra.mxu0 %v337
    %349 = vmatpush.msra.mxu0 %v336
    %350 = vmatpush.msra.mxu0 %v335
    %351 = vmatpush.msra.mxu0 %v334
    %352 = vmatpush.msra.mxu0 %v333
    %353 = vmatpush.msra.mxu0 %v332
    %354 = vmatpush.msra.mxu0 %v331
    %355 = vmatpush.msra.mxu0 %v330
    %356 = vmatpush.msra.mxu0 %v329
    %357 = vmatpush.msra.mxu0 %v328
    %358 = vmatpush.msra.mxu0 %v327
    %359 = vmatmul.f32.gmra.mxu0 %v326
    %v360 = vpop.f32.mrf.mxu0
    %v361 = vadd.f32 0.0, %v360
    %362 = vdwg.mxu0
    %v363 = vrot.slane %v361, 4
    %v364 = vadd.f32 %v361, %v363
    %v365 = vrot.slane %v364, 2
    %v366 = vadd.f32 %v364, %v365
    %v367 = vrot.slane %v366, 1
    %v368 = vadd.f32 %v366, %v367
    %v369 = vmul.f32 %v368, 0.125
    %v370 = vmul.f32 %v361, %v361
    %v371 = vrot.slane %v370, 4
    %v372 = vadd.f32 %v370, %v371
    %v373 = vrot.slane %v372, 2
    %v374 = vadd.f32 %v372, %v373
    %v375 = vrot.slane %v374, 1
    %v376 = vadd.f32 %v374, %v375
    %v377 = vmul.f32 %v376, 0.125
    %v378 = vmul.f32 %v369, %v369
    %v379 = vsub.f32 %v377, %v378
    %v380 = vmax.f32 %v379, 0.0
    %v381 = vadd.f32 %v380, 1e-05
    %v382 = vrsqrt.pop %v381
    %v383 = vmul.f32 %v382, %v381
    %v384 = vmul.f32 %v383, %v382
    %v385 = vmul.f32 0.5, %v384
    %v386 = vsub.f32 1.5, %v385
    %v387 = vmul.f32 %v382, %v386
    %vm388 = vweird.f32 %v381
    %vm389 = vweird.f32 %v382
    %vm390 = vmor %vm388, %vm389
    %v391 = vsel %vm390, %v382, %v387
    %v392 = vld [vmem:[%s8] sm:$0x3]
    %v393 = vmul.f32 %v392, %v391
    %v394 = vmul.f32 %v369, %v393
    %v396 = vrot.slane %v394, 7
    %v398 = vsub.f32 %v392, %v396
    %v399 = vperm.slane %v393, 0
    %v400 = vmul.f32 %v361, %v399
    %v401 = vperm.slane %v398, 1
    %v402 = vadd.f32 %v400, %v401
    %v403 = vmax.f32 %v402, 0.0
    %v404 = vxor.u32 %v403, 2147483648
    %v405 = vmul.f32 %v404, 1.442695
    %v406 = vpow.pop %v405
    %v407 = vadd.f32 %v406, 1.0
    %v408 = vrcp.pop %v407
    %v409 = vmul.f32 %v407, %v408
    %v410 = vsub.f32 1.0, %v409
    %v411 = vmul.f32 %v408, %v410
    %v412 = vadd.f32 %v408, %v411
    %vm413 = vweird.f32 %v407
    %vm414 = vweird.f32 %v408
    %vm415 = vmor %vm413, %vm414
    %v416 = vsel %vm415, %v408, %v412
    %v417 = vand.u32 2147483647, %v407
    %vm418 = vcmp.eq.f32.partialorder %v417, 8.507059e+37
    %v419 = vand.u32 %v407, 2147483648
    %v420 = vor.u32 1.1754944e-38, %v419
    %v421 = vsel %vm418, %v420, %v416
    %v422 = vmul.f32 1.0, %v421
    %423 = vst [vmem:[%s9] sm:$0xff] %v422
    // Predicated region
    $region54: #{_ae_forward_jit.1} parent=1 // pred_check
      _
    $region55: #{_ae_forward_jit.1} parent=1 // pred_check_branch
      %425 = sbr.rel (0) target = $region57
    $region56: #{_ae_forward_jit.1} parent=1 // pred_region
      _
    $region57: #{_ae_forward_jit.1} parent=1 // pred_fallthru
      _
    // Predicated region
    $region58: #{_ae_forward_jit.1} parent=1 // pred_check
      _
    $region59: #{_ae_forward_jit.1} parent=1 // pred_check_branch
      %427 = sbr.rel (0) target = $region61
    $region60: #{_ae_forward_jit.1} parent=1 // pred_region
      _
    $region61: #{_ae_forward_jit.1} parent=1 // pred_fallthru
      _
    %428 = vsyncpa [#allocation3], 1
    %429 = vsyncpa [#allocation5], 1
    %430 = vsyncpa [#allocation8], 1

</llo_original>
